<compile_context>
chip_gen: v6e
topology: v6e:2x2x1
jax: 0.10.0
libtpu: 0.0.40
codegen_flags: <defaults>
</compile_context>

<pallas_src>
import functools
import itertools
import math

import jax
import jax.numpy as jnp
from jax.experimental import pallas as pl
from jax.experimental.pallas import tpu as pltpu


# ==========================================================================
# Fast path: direct stride-1 conv.  One padded input frame per grid step,
# spatial taps folded into the MXU contraction via VMEM-side lane shifts,
# temporal taps accumulated across the innermost ("arbitrary") grid axis.
# ==========================================================================
def _direct_conv_kernel(x_ref, w_ref, b_ref, o_ref, p_ref, acc_ref, *,
                        tap_offsets, cin, lout, n_kt):
    # x_ref  : (1, 1, Cin, L)      one padded input frame, flattened (Hp*Wp), bf16
    # w_ref  : (1, Cout, K)        weight slice for this temporal tap, K = Kh*Kw*Cin
    # b_ref  : (Cout, 1)           bias (f32)
    # o_ref  : (1, 1, Cout, Lout)  output frame in flat padded coords
    # p_ref  : (K, Lout)           VMEM im2col patch matrix (never touches HBM)
    # acc_ref: (Cout, Lout) f32    accumulator across the temporal-tap grid axis
    kt = pl.program_id(2)

    # Build tap-folded contraction rows: each spatial tap is just a
    # lane-shifted static slice of the flat plane (VMEM-only traffic).
    for i, off in enumerate(tap_offsets):
        p_ref[i * cin:(i + 1) * cin, :] = x_ref[0, 0, :, pl.ds(off, lout)]

    part = jnp.dot(w_ref[0], p_ref[...], preferred_element_type=jnp.float32)

    @pl.when(kt == 0)
    def _():
        acc_ref[...] = part + b_ref[...]          # bias broadcast along lanes

    @pl.when(kt > 0)
    def _():
        acc_ref[...] = acc_ref[...] + part

    @pl.when(kt == n_kt - 1)
    def _():
        o_ref[0, 0] = acc_ref[...].astype(o_ref.dtype)


def _direct_conv(x, w, bias, padding, *, compute_dtype=jnp.bfloat16,
                 out_dtype=None, vmem_limit_bytes=40 * 1024 * 1024):
    """Stride-1 N-D conv (nd = 2 or 3).  x: (N, Cin, *sp), w: (Cout, Cin, *ks)."""
    nd = x.ndim - 2
    n, cin = x.shape[:2]
    cout = w.shape[0]
    out_dtype = x.dtype if out_dtype is None else out_dtype

    # Unify 2-D and 3-D convs by adding a unit temporal axis for nd == 2.
    if nd == 2:
        x5, w5 = x[:, :, None], w[:, :, None]
        pt, (ph, pw) = 0, tuple(padding)
    else:
        x5, w5 = x, w
        pt, ph, pw = padding
    kt, kh, kw = w5.shape[2:]
    t, h, wdim = x5.shape[2:]

    tp, hp, wp = t + 2 * pt, h + 2 * ph, wdim + 2 * pw
    to, ho, wo = tp - kt + 1, hp - kh + 1, wp - kw + 1
    l_in = hp * wp
    lout = (ho - 1) * wp + wo            # last valid flat output position + 1
    ckk = cin * kh * kw

    # (N, Cin, Tp, Hp, Wp) -> (N, Tp, Cin, Hp*Wp) in bf16 (one fused XLA pass).
    xp = jnp.pad(x5.astype(compute_dtype),
                 ((0, 0), (0, 0), (pt, pt), (ph, ph), (pw, pw)))
    xf = jnp.transpose(xp, (0, 2, 1, 3, 4)).reshape(n, tp, cin, l_in)

    # (Cout, Cin, Kt, Kh, Kw) -> (Kt, Cout, Kh*Kw*Cin): rows are (kh, kw)-major /
    # cin-minor, matching the in-kernel patch build order above.
    w3 = jnp.transpose(w5, (2, 0, 3, 4, 1)).reshape(kt, cout, ckk).astype(compute_dtype)

    b2 = (jnp.zeros((cout, 1), jnp.float32) if bias is None
          else bias.reshape(cout, 1).astype(jnp.float32))

    tap_offsets = tuple(ih * wp + iw for ih in range(kh) for iw in range(kw))
    kernel = functools.partial(_direct_conv_kernel, tap_offsets=tap_offsets,
                               cin=cin, lout=lout, n_kt=kt)

    osize = jnp.dtype(out_dtype).itemsize
    flops = 2 * n * to * kt * cout * ckk * lout
    bytes_accessed = (n * to * kt * cin * l_in * 2 + kt * cout * ckk * 2
                      + n * to * cout * lout * osize)

    out_flat = pl.pallas_call(
        kernel,
        out_shape=jax.ShapeDtypeStruct((n, to, cout, lout), out_dtype),
        grid_spec=pltpu.PrefetchScalarGridSpec(
            num_scalar_prefetch=0,
            grid=(n, to, kt),                       # kt innermost (reduction)
            in_specs=[
                pl.BlockSpec((1, 1, cin, l_in), lambda i, j, k: (i, j + k, 0, 0)),
                pl.BlockSpec((1, cout, ckk), lambda i, j, k: (k, 0, 0)),
                pl.BlockSpec((cout, 1), lambda i, j, k: (0, 0)),
            ],
            out_specs=pl.BlockSpec((1, 1, cout, lout),
                                   lambda i, j, k: (i, j, 0, 0)),
            scratch_shapes=[
                pltpu.VMEM((ckk, lout), compute_dtype),   # patch matrix
                pltpu.VMEM((cout, lout), jnp.float32),    # f32 accumulator
            ],
        ),
        compiler_params=pltpu.CompilerParams(
            dimension_semantics=("parallel", "parallel", "arbitrary"),
            vmem_limit_bytes=vmem_limit_bytes,
        ),
        cost_estimate=pl.CostEstimate(flops=int(flops), transcendentals=0,
                                      bytes_accessed=int(bytes_accessed)),
    )(xf, w3, b2)

    # flat padded coords -> (N, Cout, To, Ho, Wo); one fused XLA copy over the
    # small Cout-channel output stream (drops the Wp-Wo garbage columns).
    out = jnp.pad(out_flat, ((0, 0), (0, 0), (0, 0), (0, ho * wp - lout)))
    out = out.reshape(n, to, cout, ho, wp)[..., :wo]
    out = jnp.moveaxis(out, 1, 2)                      # (N, Cout, To, Ho, Wo)
    if nd == 2:
        out = out[:, :, 0]
    return out


# ==========================================================================
# Fallback path (strided / oversized convs): im2col + lane-dense matmul.
# ==========================================================================
def _matmul_conv_kernel(p_ref, w_ref, b_ref, o_ref):
    # p_ref: (KC, tm)  w_ref: (Cout, KC)  b_ref: (Cout, 1)  o_ref: (Cout, tm)
    acc = jnp.dot(w_ref[...], p_ref[...], preferred_element_type=jnp.float32)
    o_ref[...] = (acc + b_ref[...]).astype(o_ref.dtype)


def _pick_tile(m, cap=8192):
    """Largest lane-aligned tile <= cap that divides M, else largest tile + pad."""
    candidates = [t for t in (32768, 16384, 8192, 4096, 2048, 1024, 512, 256, 128)
                  if t <= cap]
    for t in candidates:
        if m % t == 0:
            return t, m
    if m < 128:
        return 128, 128
    t = candidates[0]                      # review fix: biggest tile, pad M
    return t, ((m + t - 1) // t) * t


def _im2col_conv(x, w, bias, stride, padding, *, compute_dtype=jnp.bfloat16,
                 out_dtype=None, tm_cap=8192):
    nd = x.ndim - 2
    n, cin = x.shape[0], x.shape[1]
    cout = w.shape[0]
    ksz = tuple(w.shape[2:])
    kc = math.prod(ksz) * cin
    out_dtype = x.dtype if out_dtype is None else out_dtype

    x_cf = jnp.transpose(x, (1, 0) + tuple(range(2, 2 + nd))).astype(compute_dtype)
    pads = [(0, 0), (0, 0)] + [(pp, pp) for pp in padding]
    xp = jnp.pad(x_cf, pads)
    out_spatial = tuple((xp.shape[2 + d] - ksz[d]) // stride[d] + 1
                        for d in range(nd))
    m = n * math.prod(out_spatial)

    taps = []
    for kidx in itertools.product(*[range(kk) for kk in ksz]):
        sl = (slice(None), slice(None)) + tuple(
            slice(kidx[d], kidx[d] + (out_spatial[d] - 1) * stride[d] + 1, stride[d])
            for d in range(nd))
        taps.append(xp[sl].reshape(cin, m))
    patches_t = jnp.concatenate(taps, axis=0)                 # (K*Cin, M)

    w_t = jnp.transpose(w, (0,) + tuple(range(2, 2 + nd)) + (1,)) \
             .reshape(cout, kc).astype(compute_dtype)
    bias2d = (jnp.zeros((cout, 1), jnp.float32) if bias is None
              else bias.reshape(cout, 1).astype(jnp.float32))

    tm, m_pad = _pick_tile(m, tm_cap)
    if m_pad != m:
        patches_t = jnp.pad(patches_t, ((0, 0), (0, m_pad - m)))

    osize = jnp.dtype(out_dtype).itemsize
    out = pl.pallas_call(
        _matmul_conv_kernel,
        out_shape=jax.ShapeDtypeStruct((cout, m_pad), out_dtype),
        grid_spec=pltpu.PrefetchScalarGridSpec(
            num_scalar_prefetch=0,
            grid=(m_pad // tm,),
            in_specs=[
                pl.BlockSpec((kc, tm), lambda i: (0, i)),
                pl.BlockSpec((cout, kc), lambda i: (0, 0)),
                pl.BlockSpec((cout, 1), lambda i: (0, 0)),
            ],
            out_specs=pl.BlockSpec((cout, tm), lambda i: (0, i)),
        ),
        compiler_params=pltpu.CompilerParams(
            dimension_semantics=("parallel",)),
        cost_estimate=pl.CostEstimate(
            flops=int(2 * cout * kc * m_pad), transcendentals=0,
            bytes_accessed=int(kc * m_pad * 2 + cout * kc * 2
                               + cout * m_pad * osize)),
    )(patches_t, w_t, bias2d)

    out = out[:, :m].reshape((cout, n) + out_spatial)
    return jnp.transpose(out, (1, 0) + tuple(range(2, 2 + nd)))


# ==========================================================================
# Dispatcher
# ==========================================================================
def _pallas_conv(x, w, bias, stride, padding, *, compute_dtype=jnp.bfloat16,
                 out_dtype=None):
    nd = x.ndim - 2
    out_dtype = x.dtype if out_dtype is None else out_dtype
    if all(int(s) == 1 for s in stride):
        cin, cout = x.shape[1], w.shape[0]
        kh, kw = w.shape[-2], w.shape[-1]
        hp = x.shape[-2] + 2 * padding[-2]
        wp = x.shape[-1] + 2 * padding[-1]
        ho, wo = hp - kh + 1, wp - kw + 1
        l_in, lout = hp * wp, (ho - 1) * wp + wo
        ckk = cin * kh * kw
        osize = jnp.dtype(out_dtype).itemsize
        vmem_est = (2 * cin * l_in * 2 + 2 * cout * lout * osize
                    + ckk * lout * 2 + cout * lout * 4)
        if ho > 0 and wo > 0 and vmem_est <= 24 * 1024 * 1024:
            return _direct_conv(x, w, bias, padding,
                                compute_dtype=compute_dtype, out_dtype=out_dtype)
    return _im2col_conv(x, w, bias, stride, padding,
                        compute_dtype=compute_dtype, out_dtype=out_dtype)


# ==========================================================================
# JAX re-implementation of the PyTorch Conv module (forward pass)
# ==========================================================================
def _size_nd(v, nd):
    if isinstance(v, int):
        return (v,) * nd
    v = tuple(v)
    return v[-nd:]


class Conv:
    def __init__(self, *, nd, in_channels, out_channels, kernel_size,
                 stride=1, padding=0, bias=True, transposed=False,
                 causal_pad="constant", direction="forward",
                 inflation="tail", gain=1.0, key=None,
                 compute_dtype=jnp.bfloat16, out_dtype=None):
        assert nd in (2, 3)
        self.nd = nd
        self.in_channels = in_channels
        self.out_channels = out_channels
        self.kernel_size = _size_nd(kernel_size, nd)
        self.stride = _size_nd(stride, nd)
        self.padding = _size_nd(padding, nd)
        self.transposed = transposed
        self.causal_pad = causal_pad
        self.direction = direction
        self.inflation = inflation
        self.gain = gain
        self.compute_dtype = compute_dtype
        self.out_dtype = out_dtype
        self.channels = (out_channels, in_channels) if not transposed \
            else (in_channels, out_channels)

        # deterministic init following _ConvNd.reset_parameters
        # (kaiming_uniform with a=sqrt(5) -> U(-1/sqrt(fan_in), 1/sqrt(fan_in)))
        key = jax.random.PRNGKey(0) if key is None else key
        kw_, kb_ = jax.random.split(key)
        fan_in = self.channels[1] * math.prod(self.kernel_size)
        bound = 1.0 / math.sqrt(fan_in)
        self.weight = jax.random.uniform(
            kw_, (*self.channels, *self.kernel_size),
            minval=-bound, maxval=bound, dtype=jnp.float32)
        self.bias = jax.random.uniform(
            kb_, (out_channels,), minval=-bound, maxval=bound,
            dtype=jnp.float32) if bias else None
        if self.gain != 1.0:
            self.weight = self.weight * self.gain
            if self.bias is not None:
                self.bias = self.bias * self.gain

    def get_merged_weight(self):
        w = self.weight
        if not self.transposed:
            i = -1 if self.direction == "forward" else 0
            if self.causal_pad == "constant":
                return w[:, :, i]
            if self.causal_pad == "replicate":
                return jnp.sum(w, axis=2)
        else:
            i = 0 if self.direction == "forward" else -1
            kt, st = self.kernel_size[0], self.stride[0]
            if self.causal_pad == "constant":
                return w[:, :, i]
            if self.causal_pad == "replicate":
                return jnp.sum(w[:, :, (kt + i) % st::st], axis=2)
        raise NotImplementedError

    def __call__(self, x):
        w, b, s, p = self.weight, self.bias, self.stride, self.padding
        if self.transposed:
            # TODO(synk): transposed (conv_transpose) path has no Pallas impl here.
            raise NotImplementedError("transposed conv not implemented")
        if x.ndim == 4 and w.ndim == 5:
            w, s, p = self.get_merged_weight(), s[-2:], p[-2:]
        if x.ndim not in (4, 5):
            raise NotImplementedError
        return _pallas_conv(x, w, b, s, p, compute_dtype=self.compute_dtype,
                            out_dtype=self.out_dtype)


# ==========================================================================
# Pure-XLA reference (same bf16-operand / f32-accumulate semantics)
# ==========================================================================
def _ref_conv(x, w, b, stride, padding, nd, compute_dtype=jnp.bfloat16):
    dn = ("NCHW", "OIHW", "NCHW") if nd == 2 else ("NCDHW", "OIDHW", "NCDHW")
    out = jax.lax.conv_general_dilated(
        x.astype(compute_dtype), w.astype(compute_dtype),
        window_strides=stride, padding=[(p, p) for p in padding],
        dimension_numbers=dn, preferred_element_type=jnp.float32)
    if b is not None:
        out = out + b.reshape((1, -1) + (1,) * nd).astype(jnp.float32)
    return out.astype(x.dtype)


if __name__ == "__main__":
    root = jax.random.PRNGKey(0)
    k_mod, k_mod2, k_x5, k_x4, k_x5b = jax.random.split(root, 5)

    conv = Conv(nd=3, in_channels=4, out_channels=8, kernel_size=3,
                stride=1, padding=1, bias=True, transposed=False,
                causal_pad="replicate", direction="forward",
                inflation="tail", gain=1.0, key=k_mod)

    # 5-D input, stride-1 3-D conv (direct Pallas kernel)
    x5 = jax.random.normal(k_x5, (2, 4, 8, 16, 16), jnp.float32)
    y5 = conv(x5)
    jax.block_until_ready(y5)
    ref5 = _ref_conv(x5, conv.weight, conv.bias, conv.stride, conv.padding, 3)
    assert y5.shape == ref5.shape, (y5.shape, ref5.shape)
    assert jnp.allclose(y5, ref5, atol=5e-3, rtol=5e-3)

    # 4-D input with 5-D weight -> merged ("replicate") 2-D conv (direct kernel)
    x4 = jax.random.normal(k_x4, (2, 4, 16, 16), jnp.float32)
    y4 = conv(x4)
    jax.block_until_ready(y4)
    ref4 = _ref_conv(x4, conv.get_merged_weight(), conv.bias,
                     conv.stride[-2:], conv.padding[-2:], 2)
    assert y4.shape == ref4.shape, (y4.shape, ref4.shape)
    assert jnp.allclose(y4, ref4, atol=5e-3, rtol=5e-3)

    # strided 3-D conv exercises the im2col fallback path
    conv_s2 = Conv(nd=3, in_channels=4, out_channels=8, kernel_size=3,
                   stride=2, padding=1, bias=True, transposed=False,
                   causal_pad="replicate", direction="forward",
                   inflation="tail", gain=1.0, key=k_mod2)
    x5b = jax.random.normal(k_x5b, (2, 4, 8, 16, 16), jnp.float32)
    y5b = conv_s2(x5b)
    jax.block_until_ready(y5b)
    ref5b = _ref_conv(x5b, conv_s2.weight, conv_s2.bias,
                      conv_s2.stride, conv_s2.padding, 3)
    assert y5b.shape == ref5b.shape, (y5b.shape, ref5b.shape)
    assert jnp.allclose(y5b, ref5b, atol=5e-3, rtol=5e-3)

    print("KERNEL_OK")
</pallas_src>

<mosaic_0001>
module attributes {stable_mosaic.version = 11 : i64} {
  func.func @_direct_conv_kernel(%arg0: i32, %arg1: i32, %arg2: i32, %arg3: memref<1x1x4x324xbf16, #tpu.memory_space<vmem>>, %arg4: memref<1x8x36xbf16, #tpu.memory_space<vmem>>, %arg5: memref<8x1xf32, #tpu.memory_space<vmem>>, %arg6: memref<1x1x8x286xf32, #tpu.memory_space<vmem>>, %arg7: memref<36x286xbf16, #tpu.memory_space<vmem>>, %arg8: memref<8x286xf32, #tpu.memory_space<vmem>>) attributes {dimension_semantics = [#tpu.dimension_semantics<parallel>, #tpu.dimension_semantics<parallel>, #tpu.dimension_semantics<arbitrary>], iteration_bounds = array<i64: 2, 8, 3>, scalar_prefetch = 0 : i64, scratch_operands = 2 : i64, tpu.core_type = #tpu.core_type<tc>, window_params = [{transform_indices = @transform_0, window_bounds = array<i64: 1, 1, 4, 324>}, {transform_indices = @transform_1, window_bounds = array<i64: 1, 8, 36>}, {pipeline_mode = #tpu.pipeline_mode<synchronous>, transform_indices = @transform_2, window_bounds = array<i64: 8, 1>}, {transform_indices = @transform_3, window_bounds = array<i64: 1, 1, 8, 286>}]} {
    %c0 = arith.constant 0 : index
    %c0_0 = arith.constant 0 : index
    %c0_1 = arith.constant 0 : index
    %c0_2 = arith.constant 0 : index
    %0 = vector.load %arg3[%c0, %c0_0, %c0_1, %c0_2] : memref<1x1x4x324xbf16, #tpu.memory_space<vmem>>, vector<1x1x4x286xbf16>
    %1 = vector.shape_cast %0 : vector<1x1x4x286xbf16> to vector<4x286xbf16>
    %c0_3 = arith.constant 0 : index
    %c0_4 = arith.constant 0 : index
    %2 = vector.load %arg7[%c0_3, %c0_4] : memref<36x286xbf16, #tpu.memory_space<vmem>>, vector<4x286xbf16>
    tpu.vector_store %arg7[%c0_3, %c0_4], %1 {strides = array<i32>} : memref<36x286xbf16, #tpu.memory_space<vmem>>, vector<4x286xbf16>,
    %c0_5 = arith.constant 0 : index
    %c0_6 = arith.constant 0 : index
    %c0_7 = arith.constant 0 : index
    %c1 = arith.constant 1 : index
    %3 = vector.load %arg3[%c0_5, %c0_6, %c0_7, %c1] : memref<1x1x4x324xbf16, #tpu.memory_space<vmem>>, vector<1x1x4x286xbf16>
    %4 = vector.shape_cast %3 : vector<1x1x4x286xbf16> to vector<4x286xbf16>
    %c4 = arith.constant 4 : index
    %c0_8 = arith.constant 0 : index
    %5 = vector.load %arg7[%c4, %c0_8] : memref<36x286xbf16, #tpu.memory_space<vmem>>, vector<4x286xbf16>
    tpu.vector_store %arg7[%c4, %c0_8], %4 {strides = array<i32>} : memref<36x286xbf16, #tpu.memory_space<vmem>>, vector<4x286xbf16>,
    %c0_9 = arith.constant 0 : index
    %c0_10 = arith.constant 0 : index
    %c0_11 = arith.constant 0 : index
    %c2 = arith.constant 2 : index
    %6 = vector.load %arg3[%c0_9, %c0_10, %c0_11, %c2] : memref<1x1x4x324xbf16, #tpu.memory_space<vmem>>, vector<1x1x4x286xbf16>
    %7 = vector.shape_cast %6 : vector<1x1x4x286xbf16> to vector<4x286xbf16>
    %c8 = arith.constant 8 : index
    %c0_12 = arith.constant 0 : index
    %8 = vector.load %arg7[%c8, %c0_12] : memref<36x286xbf16, #tpu.memory_space<vmem>>, vector<4x286xbf16>
    tpu.vector_store %arg7[%c8, %c0_12], %7 {strides = array<i32>} : memref<36x286xbf16, #tpu.memory_space<vmem>>, vector<4x286xbf16>,
    %c0_13 = arith.constant 0 : index
    %c0_14 = arith.constant 0 : index
    %c0_15 = arith.constant 0 : index
    %c18 = arith.constant 18 : index
    %9 = vector.load %arg3[%c0_13, %c0_14, %c0_15, %c18] : memref<1x1x4x324xbf16, #tpu.memory_space<vmem>>, vector<1x1x4x286xbf16>
    %10 = vector.shape_cast %9 : vector<1x1x4x286xbf16> to vector<4x286xbf16>
    %c12 = arith.constant 12 : index
    %c0_16 = arith.constant 0 : index
    %11 = vector.load %arg7[%c12, %c0_16] : memref<36x286xbf16, #tpu.memory_space<vmem>>, vector<4x286xbf16>
    tpu.vector_store %arg7[%c12, %c0_16], %10 {strides = array<i32>} : memref<36x286xbf16, #tpu.memory_space<vmem>>, vector<4x286xbf16>,
    %c0_17 = arith.constant 0 : index
    %c0_18 = arith.constant 0 : index
    %c0_19 = arith.constant 0 : index
    %c19 = arith.constant 19 : index
    %12 = vector.load %arg3[%c0_17, %c0_18, %c0_19, %c19] : memref<1x1x4x324xbf16, #tpu.memory_space<vmem>>, vector<1x1x4x286xbf16>
    %13 = vector.shape_cast %12 : vector<1x1x4x286xbf16> to vector<4x286xbf16>
    %c16 = arith.constant 16 : index
    %c0_20 = arith.constant 0 : index
    %14 = vector.load %arg7[%c16, %c0_20] : memref<36x286xbf16, #tpu.memory_space<vmem>>, vector<4x286xbf16>
    tpu.vector_store %arg7[%c16, %c0_20], %13 {strides = array<i32>} : memref<36x286xbf16, #tpu.memory_space<vmem>>, vector<4x286xbf16>,
    %c0_21 = arith.constant 0 : index
    %c0_22 = arith.constant 0 : index
    %c0_23 = arith.constant 0 : index
    %c20 = arith.constant 20 : index
    %15 = vector.load %arg3[%c0_21, %c0_22, %c0_23, %c20] : memref<1x1x4x324xbf16, #tpu.memory_space<vmem>>, vector<1x1x4x286xbf16>
    %16 = vector.shape_cast %15 : vector<1x1x4x286xbf16> to vector<4x286xbf16>
    %c20_24 = arith.constant 20 : index
    %c0_25 = arith.constant 0 : index
    %17 = vector.load %arg7[%c20_24, %c0_25] : memref<36x286xbf16, #tpu.memory_space<vmem>>, vector<4x286xbf16>
    tpu.vector_store %arg7[%c20_24, %c0_25], %16 {strides = array<i32>} : memref<36x286xbf16, #tpu.memory_space<vmem>>, vector<4x286xbf16>,
    %c0_26 = arith.constant 0 : index
    %c0_27 = arith.constant 0 : index
    %c0_28 = arith.constant 0 : index
    %c36 = arith.constant 36 : index
    %18 = vector.load %arg3[%c0_26, %c0_27, %c0_28, %c36] : memref<1x1x4x324xbf16, #tpu.memory_space<vmem>>, vector<1x1x4x286xbf16>
    %19 = vector.shape_cast %18 : vector<1x1x4x286xbf16> to vector<4x286xbf16>
    %c24 = arith.constant 24 : index
    %c0_29 = arith.constant 0 : index
    %20 = vector.load %arg7[%c24, %c0_29] : memref<36x286xbf16, #tpu.memory_space<vmem>>, vector<4x286xbf16>
    tpu.vector_store %arg7[%c24, %c0_29], %19 {strides = array<i32>} : memref<36x286xbf16, #tpu.memory_space<vmem>>, vector<4x286xbf16>,
    %c0_30 = arith.constant 0 : index
    %c0_31 = arith.constant 0 : index
    %c0_32 = arith.constant 0 : index
    %c37 = arith.constant 37 : index
    %21 = vector.load %arg3[%c0_30, %c0_31, %c0_32, %c37] : memref<1x1x4x324xbf16, #tpu.memory_space<vmem>>, vector<1x1x4x286xbf16>
    %22 = vector.shape_cast %21 : vector<1x1x4x286xbf16> to vector<4x286xbf16>
    %c28 = arith.constant 28 : index
    %c0_33 = arith.constant 0 : index
    %23 = vector.load %arg7[%c28, %c0_33] : memref<36x286xbf16, #tpu.memory_space<vmem>>, vector<4x286xbf16>
    tpu.vector_store %arg7[%c28, %c0_33], %22 {strides = array<i32>} : memref<36x286xbf16, #tpu.memory_space<vmem>>, vector<4x286xbf16>,
    %c0_34 = arith.constant 0 : index
    %c0_35 = arith.constant 0 : index
    %c0_36 = arith.constant 0 : index
    %c38 = arith.constant 38 : index
    %24 = vector.load %arg3[%c0_34, %c0_35, %c0_36, %c38] : memref<1x1x4x324xbf16, #tpu.memory_space<vmem>>, vector<1x1x4x286xbf16>
    %25 = vector.shape_cast %24 : vector<1x1x4x286xbf16> to vector<4x286xbf16>
    %c32 = arith.constant 32 : index
    %c0_37 = arith.constant 0 : index
    %26 = vector.load %arg7[%c32, %c0_37] : memref<36x286xbf16, #tpu.memory_space<vmem>>, vector<4x286xbf16>
    tpu.vector_store %arg7[%c32, %c0_37], %25 {strides = array<i32>} : memref<36x286xbf16, #tpu.memory_space<vmem>>, vector<4x286xbf16>,
    %c0_38 = arith.constant 0 : index
    %c0_39 = arith.constant 0 : index
    %c0_40 = arith.constant 0 : index
    %27 = vector.load %arg4[%c0_38, %c0_39, %c0_40] : memref<1x8x36xbf16, #tpu.memory_space<vmem>>, vector<1x8x36xbf16>
    %28 = vector.shape_cast %27 : vector<1x8x36xbf16> to vector<8x36xbf16>
    %c0_41 = arith.constant 0 : index
    %c0_42 = arith.constant 0 : index
    %29 = vector.load %arg7[%c0_41, %c0_42] : memref<36x286xbf16, #tpu.memory_space<vmem>>, vector<36x286xbf16>
    %cst = arith.constant dense<0.000000e+00> : vector<8x286xf32>
    %30 = tpu.matmul %28, %29, %cst {dimension_numbers = #tpu.dot_dimension_numbers<[1], [0], [0], [1], [0, 0, 1, 1], [], []>} : vector<8x36xbf16>, vector<36x286xbf16>, vector<8x286xf32> -> vector<8x286xf32>
    %c0_i32 = arith.constant 0 : i32
    %31 = arith.cmpi eq, %arg2, %c0_i32 : i32
    %32 = arith.extui %31 : i1 to i32
    %c0_i32_43 = arith.constant 0 : i32
    %33 = arith.cmpi ne, %32, %c0_i32_43 : i32
    scf.if %33 {
      %c0_47 = arith.constant 0 : index
      %c0_48 = arith.constant 0 : index
      %40 = vector.load %arg5[%c0_47, %c0_48] : memref<8x1xf32, #tpu.memory_space<vmem>>, vector<8x1xf32>
      %41 = vector.broadcast %40 : vector<8x1xf32> to vector<8x286xf32>
      %42 = arith.addf %30, %41 : vector<8x286xf32>
      %c0_49 = arith.constant 0 : index
      %c0_50 = arith.constant 0 : index
      %43 = vector.load %arg8[%c0_49, %c0_50] : memref<8x286xf32, #tpu.memory_space<vmem>>, vector<8x286xf32>
      tpu.vector_store %arg8[%c0_49, %c0_50], %42 {strides = array<i32>} : memref<8x286xf32, #tpu.memory_space<vmem>>, vector<8x286xf32>,
    } else {
    }
    %c0_i32_44 = arith.constant 0 : i32
    %34 = arith.cmpi sgt, %arg2, %c0_i32_44 : i32
    %35 = arith.extui %34 : i1 to i32
    %c0_i32_45 = arith.constant 0 : i32
    %36 = arith.cmpi ne, %35, %c0_i32_45 : i32
    scf.if %36 {
      %c0_47 = arith.constant 0 : index
      %c0_48 = arith.constant 0 : index
      %40 = vector.load %arg8[%c0_47, %c0_48] : memref<8x286xf32, #tpu.memory_space<vmem>>, vector<8x286xf32>
      %41 = arith.addf %40, %30 : vector<8x286xf32>
      %c0_49 = arith.constant 0 : index
      %c0_50 = arith.constant 0 : index
      %42 = vector.load %arg8[%c0_49, %c0_50] : memref<8x286xf32, #tpu.memory_space<vmem>>, vector<8x286xf32>
      tpu.vector_store %arg8[%c0_49, %c0_50], %41 {strides = array<i32>} : memref<8x286xf32, #tpu.memory_space<vmem>>, vector<8x286xf32>,
    } else {
    }
    %c2_i32 = arith.constant 2 : i32
    %37 = arith.cmpi eq, %arg2, %c2_i32 : i32
    %38 = arith.extui %37 : i1 to i32
    %c0_i32_46 = arith.constant 0 : i32
    %39 = arith.cmpi ne, %38, %c0_i32_46 : i32
    scf.if %39 {
      %c0_47 = arith.constant 0 : index
      %c0_48 = arith.constant 0 : index
      %40 = vector.load %arg8[%c0_47, %c0_48] : memref<8x286xf32, #tpu.memory_space<vmem>>, vector<8x286xf32>
      %c0_49 = arith.constant 0 : index
      %c0_50 = arith.constant 0 : index
      %c0_51 = arith.constant 0 : index
      %c0_52 = arith.constant 0 : index
      %41 = vector.load %arg6[%c0_49, %c0_50, %c0_51, %c0_52] : memref<1x1x8x286xf32, #tpu.memory_space<vmem>>, vector<1x1x8x286xf32>
      %42 = vector.shape_cast %41 : vector<1x1x8x286xf32> to vector<8x286xf32>
      %43 = vector.shape_cast %40 : vector<8x286xf32> to vector<1x1x8x286xf32>
      tpu.vector_store %arg6[%c0_49, %c0_50, %c0_51, %c0_52], %43 {strides = array<i32>} : memref<1x1x8x286xf32, #tpu.memory_space<vmem>>, vector<1x1x8x286xf32>,
    } else {
    }
    return
  }
  func.func @transform_0(%arg0: i32, %arg1: i32, %arg2: i32) -> (i32, i32, i32, i32) {
    %0 = arith.addi %arg1, %arg2 : i32
    %c0_i32 = arith.constant 0 : i32
    %c0_i32_0 = arith.constant 0 : i32
    %c0_i32_1 = arith.constant 0 : i32
    return %arg0, %0, %c0_i32, %c0_i32_0 : i32, i32, i32, i32
  }
  func.func @transform_1(%arg0: i32, %arg1: i32, %arg2: i32) -> (i32, i32, i32) {
    %c0_i32 = arith.constant 0 : i32
    %c0_i32_0 = arith.constant 0 : i32
    %c0_i32_1 = arith.constant 0 : i32
    return %arg2, %c0_i32, %c0_i32_0 : i32, i32, i32
  }
  func.func @transform_2(%arg0: i32, %arg1: i32, %arg2: i32) -> (i32, i32) {
    %c0_i32 = arith.constant 0 : i32
    %c0_i32_0 = arith.constant 0 : i32
    %c0_i32_1 = arith.constant 0 : i32
    return %c0_i32, %c0_i32_0 : i32, i32
  }
  func.func @transform_3(%arg0: i32, %arg1: i32, %arg2: i32) -> (i32, i32, i32, i32) {
    %c0_i32 = arith.constant 0 : i32
    %c0_i32_0 = arith.constant 0 : i32
    %c0_i32_1 = arith.constant 0 : i32
    return %arg0, %arg1, %c0_i32, %c0_i32_0 : i32, i32, i32, i32
  }
}

</mosaic_0001>

<llo_original>
// kernel: tpu_custom_call.1
$region0: #{tpu_custom_call.1}
  #allocation0 [shape = 'u32[]', space=smem, size = 0x4, offset = 0x4, fixed_abs, tag = 'smem constant byte address 0x4 - core index']
  #allocation1 [shape = 'u32[144,128]{1,0:T(1,128)}', space=vmem, size = 0x12000, scoped, tag = 'internal scratch']
  #allocation2 [shape = 'bf16[36,286]{1,0:T(8,128)(2,1)}', space=vmem, size = 0x7800, scoped, tag = 'scratch operand']
  #allocation3 [shape = 'f32[8,286]{1,0:T(8,128)}', space=vmem, size = 0x3000, scoped, tag = 'scratch operand']
  %s0 = inlined_call_operand.hbm [shape: bf16[2,10,4,324], index: 0, kind: input, shape index: {}]
  %s1 = inlined_call_operand.hbm [shape: bf16[3,8,36], index: 1, kind: input, shape index: {}]
  %s2 = inlined_call_operand.vmem [shape: f32[8,1], index: 2, kind: input, shape index: {}]
  %s3 = inlined_call_operand.hbm [shape: f32[2,8,8,286], index: 3, kind: output, shape index: {}]
  %s4 = sld [smem:[#allocation0]]
  $region65: #{tpu_custom_call.1} parent=0
    _
  %s6 = ssub.s32 1, %s4
  %s7 = scalar_select 0, %s6, %s4
  $region1: #{tpu_custom_call.1} parent=0
    #allocation4 [shape = 'u8[6144]{0}', space=vmem, size = 0x1800, scoped, tag = 'input window, operand 0']
    #allocation5 [shape = 's32[2]{0}', space=sflag, size = 0x8, scoped, tag = 'scoped memory for tpu_custom_call.1']
    #allocation6 [shape = 's32[2]{0}', space=sflag, size = 0x8, scoped, tag = 'scoped memory for tpu_custom_call.1']
    #allocation7 [shape = 'u8[4096]{0}', space=vmem, size = 0x1000, scoped, tag = 'input window, operand 1']
    #allocation8 [shape = 's32[2]{0}', space=sflag, size = 0x8, scoped, tag = 'scoped memory for tpu_custom_call.1']
    #allocation9 [shape = 'u8[24576]{0}', space=vmem, size = 0x6000, scoped, tag = 'output window, operand 0']
    %8 = vsyncpa [#allocation5], 0
    %s9 = scalar_lea.sflag [#allocation5], 1
    %10 = vsyncpa %s9, 0
    %11 = vsyncpa [#allocation8], 0
    %s12 = scalar_lea.sflag [#allocation8], 1
    %13 = vsyncpa %s12, 0
    %14 = vsyncpa [#allocation6], 0
    %s15 = scalar_lea.sflag [#allocation6], 1
    %16 = vsyncpa %s15, 0
    loop: start=0, step=1, limit=50
    $region2: #{tpu_custom_call.1} parent=1 // loop_pre_header
      _
    $region3: #{tpu_custom_call.1} parent=1 // loop_header
      %s18 = sphi 0, %s22
      %p19 = scmp.ge.s32.totalorder %s18, 50
      %s25 = sphi 0, %s44
      %s26 = sphi 0, %s40
      %s27 = sphi 0, %s36
      %s28 = sphi 0, %s25
      %s29 = sphi 0, %s26
      %s30 = sphi 0, %s27
      %s31 = sphi 0, %s28
      %s32 = sphi 0, %s29
      %s33 = sphi 0, %s30
      %s51 = sphi 0, %s53
      %s54 = sphi 0, %s51
      %s55 = sphi 0, %s54
      %s71 = sphi 0, %s55
      %s77 = sphi 0, %s79
      %s80 = sphi 0, %s77
      %s81 = sphi 0, %s80
      %s97 = sphi 0, %s81
      %s101 = sphi 0, %s101
      %s103 = sphi 0, %s101
      %s104 = sphi 0, %s103
      %s118 = sphi 0, %s104
      %s126 = sphi 0, %s128
      %s129 = sphi 0, %s126
      %s130 = sphi 0, %s129
      %s146 = sphi 0, %s130
    $region4: #{tpu_custom_call.1} parent=1 // loop_header_branch
      %21 = sbr.rel (%p19) target = $region8
    $region5: #{tpu_custom_call.1} parent=1 // loop_body
      %s23 = ssub.s32 %s18, 1
      %s24 = ssub.s32 %s18, 2
      %s34 = sadd.s32 1, %s27
      %p35 = scmp.ge.s32.totalorder %s34, 3
      %s36 = scalar_select %p35, 0, %s34
      %s37 = sadd.s32 1, %s26
      %s38 = scalar_select %p35, %s37, %s26
      %p39 = scmp.ge.s32.totalorder %s38, 8
      %s40 = scalar_select %p39, 0, %s38
      %s41 = sadd.s32 1, %s25
      %s42 = scalar_select %p39, %s41, %s25
      %p43 = scmp.ge.s32.totalorder %s42, 2
      %s44 = scalar_select %p43, 0, %s42
      %s45 = sadd.s32 %s26, %s27
      %s46 = sadd.s32 %s40, %s36
      %s47 = ssub.s32 %s25, %s44
      %s48 = ssub.s32 %s45, %s46
      %s49 = sor.u32 %s47, %s48
      %p50 = scmp.eq.s32.totalorder %s49, 0
      %s52 = sadd.s32 %s51, 1
      %s53 = scalar_select %p50, %s51, %s52
      %p56 = pneg %p50
      %p57 = scmp.eq.s32.totalorder %s18, 47
      %p58 = por %p56, %p57
      %p59 = scmp.ne.s32.totalorder %s51, %s54
      %p60 = scmp.eq.s32.totalorder %s18, 0
      %p61 = por %p59, %p60
      %p62 = scmp.ne.s32.totalorder %s51, %s54
      %p63 = scmp.eq.s32.totalorder %s23, 47
      %p64 = por %p62, %p63
      %p65 = scmp.ne.s32.totalorder %s54, %s55
      %p66 = scmp.eq.s32.totalorder %s23, 0
      %p67 = por %p65, %p66
      %p68 = scmp.ne.s32.totalorder %s54, %s55
      %p69 = scmp.eq.s32.totalorder %s24, 47
      %p70 = por %p68, %p69
      %p72 = scmp.ne.s32.totalorder %s55, %s71
      %p73 = scmp.eq.s32.totalorder %s24, 0
      %p74 = por %p72, %p73
      %s75 = ssub.s32 %s27, %s36
      %p76 = scmp.eq.s32.totalorder %s75, 0
      %s78 = sadd.s32 %s77, 1
      %s79 = scalar_select %p76, %s77, %s78
      %p82 = pneg %p76
      %p83 = scmp.eq.s32.totalorder %s18, 47
      %p84 = por %p82, %p83
      %p85 = scmp.ne.s32.totalorder %s77, %s80
      %p86 = scmp.eq.s32.totalorder %s18, 0
      %p87 = por %p85, %p86
      %p88 = scmp.ne.s32.totalorder %s77, %s80
      %p89 = scmp.eq.s32.totalorder %s23, 47
      %p90 = por %p88, %p89
      %p91 = scmp.ne.s32.totalorder %s80, %s81
      %p92 = scmp.eq.s32.totalorder %s23, 0
      %p93 = por %p91, %p92
      %p94 = scmp.ne.s32.totalorder %s80, %s81
      %p95 = scmp.eq.s32.totalorder %s24, 47
      %p96 = por %p94, %p95
      %p98 = scmp.ne.s32.totalorder %s81, %s97
      %p99 = scmp.eq.s32.totalorder %s24, 0
      %p100 = por %p98, %p99
      %s102 = sadd.s32 %s101, 1
      %p105 = scmp.eq.s32.totalorder %s18, 47
      %p106 = scmp.ne.s32.totalorder %s101, %s103
      %p107 = scmp.eq.s32.totalorder %s18, 0
      %p108 = por %p106, %p107
      %p109 = scmp.ne.s32.totalorder %s101, %s103
      %p110 = scmp.eq.s32.totalorder %s23, 47
      %p111 = por %p109, %p110
      %p112 = scmp.ne.s32.totalorder %s103, %s104
      %p113 = scmp.eq.s32.totalorder %s23, 0
      %p114 = por %p112, %p113
      %p115 = scmp.ne.s32.totalorder %s103, %s104
      %p116 = scmp.eq.s32.totalorder %s24, 47
      %p117 = por %p115, %p116
      %p119 = scmp.ne.s32.totalorder %s104, %s118
      %p120 = scmp.eq.s32.totalorder %s24, 0
      %p121 = por %p119, %p120
      %s122 = ssub.s32 %s25, %s44
      %s123 = ssub.s32 %s26, %s40
      %s124 = sor.u32 %s122, %s123
      %p125 = scmp.eq.s32.totalorder %s124, 0
      %s127 = sadd.s32 %s126, 1
      %s128 = scalar_select %p125, %s126, %s127
      %p131 = pneg %p125
      %p132 = scmp.eq.s32.totalorder %s18, 47
      %p133 = por %p131, %p132
      %p134 = scmp.ne.s32.totalorder %s126, %s129
      %p135 = scmp.eq.s32.totalorder %s18, 0
      %p136 = por %p134, %p135
      %p137 = scmp.ne.s32.totalorder %s126, %s129
      %p138 = scmp.eq.s32.totalorder %s23, 47
      %p139 = por %p137, %p138
      %p140 = scmp.ne.s32.totalorder %s129, %s130
      %p141 = scmp.eq.s32.totalorder %s23, 0
      %p142 = por %p140, %p141
      %p143 = scmp.ne.s32.totalorder %s129, %s130
      %p144 = scmp.eq.s32.totalorder %s24, 47
      %p145 = por %p143, %p144
      %p147 = scmp.ne.s32.totalorder %s130, %s146
      %p148 = scmp.eq.s32.totalorder %s24, 0
      %p149 = por %p147, %p148
      %p150 = scmp.le.s32.totalorder 1, %s18
      %p151 = scmp.lt.s32.totalorder %s18, 49
      %p152 = pnand %p150, %p151
      %p153 = pneg %p152
      // Predicated region
      $region9: #{tpu_custom_call.1} parent=5 // pred_check
        _
      $region10: #{tpu_custom_call.1} parent=5 // pred_check_branch
        %155 = sbr.rel (%p152) target = $region12
      $region11: #{tpu_custom_call.1} parent=5 // pred_region
        %s156 = ssub.s32 %s18, 1
        // Predicated region
        $region13: #{tpu_custom_call.1} parent=11 // pred_check
          %p157 = pneg %p114
        $region14: #{tpu_custom_call.1} parent=11 // pred_check_branch
          %159 = sbr.rel (%p157) target = $region16
        $region15: #{tpu_custom_call.1} parent=11 // pred_region
          _
        $region16: #{tpu_custom_call.1} parent=11 // pred_fallthru
          _
      $region12: #{tpu_custom_call.1} parent=5 // pred_fallthru
        _
      %p160 = scmp.lt.s32.totalorder %s18, 48
      // Predicated region
      $region17: #{tpu_custom_call.1} parent=5 // pred_check
        %p161 = pneg %p160
      $region18: #{tpu_custom_call.1} parent=5 // pred_check_branch
        %163 = sbr.rel (%p161) target = $region20
      $region19: #{tpu_custom_call.1} parent=5 // pred_region
        // Predicated region
        $region21: #{tpu_custom_call.1} parent=19 // pred_check
          %p164 = pneg %p61
        $region22: #{tpu_custom_call.1} parent=19 // pred_check_branch
          %166 = sbr.rel (%p164) target = $region24
        $region23: #{tpu_custom_call.1} parent=19 // pred_region
          %s167 = sand.u32 %s51, 1
          %s168 = scalar_lea.sflag [#allocation5], %s167
          %s169 = sand.u32 %s51, 1
          %s170 = smul.addr %s169, 6
          %s171 = scalar_lea.vmem [#allocation4], %s170
          %s172 = sadd.s32 %s26, %s27
          %s174 = ssub.s32 96, 96
          %175 = vsyncadd %s168, %s174
          %s176 = smul.addr %s172, 3
          %s177 = smul.addr %s25, 30
          %s178 = sadd.s32 %s176, %s177
          %s179 = smul.addr %s178, 32
          %s180 = scalar_lea.hbm %s0, %s179
          %s182 = sshll.u32 %s171, 4
          %s183 = int_to_ptr.vmem [resolvable:$true] %s182
          %185 = dma.hbm_to_vmem [thread:$0]  %s180, 96, %s183, %s168
        $region24: #{tpu_custom_call.1} parent=19 // pred_fallthru
          _
        // Predicated region
        $region25: #{tpu_custom_call.1} parent=19 // pred_check
          %p186 = pneg %p87
        $region26: #{tpu_custom_call.1} parent=19 // pred_check_branch
          %188 = sbr.rel (%p186) target = $region28
        $region27: #{tpu_custom_call.1} parent=19 // pred_region
          %s189 = sand.u32 %s77, 1
          %s190 = scalar_lea.sflag [#allocation8], %s189
          %s191 = sand.u32 %s77, 1
          %s192 = smul.addr %s191, 4
          %s193 = scalar_lea.vmem [#allocation7], %s192
          %s195 = ssub.s32 64, 64
          %196 = vsyncadd %s190, %s195
          %s197 = smul.addr %s27, 64
          %s198 = scalar_lea.hbm %s1, %s197
          %s200 = sshll.u32 %s193, 4
          %s201 = int_to_ptr.vmem [resolvable:$true] %s200
          %203 = dma.hbm_to_vmem [thread:$0]  %s198, 64, %s201, %s190
        $region28: #{tpu_custom_call.1} parent=19 // pred_fallthru
          _
      $region20: #{tpu_custom_call.1} parent=5 // pred_fallthru
        _
      %p204 = scmp.le.s32.totalorder 1, %s18
      %p205 = scmp.lt.s32.totalorder %s18, 49
      %p206 = pnand %p204, %p205
      %p207 = pneg %p206
      // Predicated region
      $region29: #{tpu_custom_call.1} parent=5 // pred_check
        _
      $region30: #{tpu_custom_call.1} parent=5 // pred_check_branch
        %209 = sbr.rel (%p206) target = $region32
      $region31: #{tpu_custom_call.1} parent=5 // pred_region
        %s210 = ssub.s32 %s18, 1
        %s211 = sand.u32 %s54, 1
        %s212 = scalar_lea.sflag [#allocation5], %s211
        %s213 = sand.u32 %s54, 1
        %s214 = smul.addr %s213, 6
        %s215 = scalar_lea.vmem [#allocation4], %s214
        // Predicated region
        $region33: #{tpu_custom_call.1} parent=31 // pred_check
          %p216 = pneg %p67
        $region34: #{tpu_custom_call.1} parent=31 // pred_check_branch
          %218 = sbr.rel (%p216) target = $region36
        $region35: #{tpu_custom_call.1} parent=31 // pred_region
          %219 = dma.done %s212, 96
        $region36: #{tpu_custom_call.1} parent=31 // pred_fallthru
          _
        %s220 = sand.u32 %s80, 1
        %s221 = scalar_lea.sflag [#allocation8], %s220
        %s222 = sand.u32 %s80, 1
        %s223 = smul.addr %s222, 4
        %s224 = scalar_lea.vmem [#allocation7], %s223
        // Predicated region
        $region37: #{tpu_custom_call.1} parent=31 // pred_check
          %p225 = pneg %p93
        $region38: #{tpu_custom_call.1} parent=31 // pred_check_branch
          %227 = sbr.rel (%p225) target = $region40
        $region39: #{tpu_custom_call.1} parent=31 // pred_region
          %228 = dma.done %s221, 64
        $region40: #{tpu_custom_call.1} parent=31 // pred_fallthru
          _
        %s229 = sand.u32 %s54, 1
        %s230 = scalar_lea.sflag [#allocation5], %s229
        %s231 = sand.u32 %s54, 1
        %s232 = smul.addr %s231, 6
        %s233 = scalar_lea.vmem [#allocation4], %s232
        %p234 = pneg %p67
        %p235 = pneg %p64
        %s236 = sand.u32 %s80, 1
        %s237 = scalar_lea.sflag [#allocation8], %s236
        %s238 = sand.u32 %s80, 1
        %s239 = smul.addr %s238, 4
        %s240 = scalar_lea.vmem [#allocation7], %s239
        %p241 = pneg %p93
        %p242 = pneg %p90
        %p243 = pneg %p114
        %p244 = pneg %p111
        %p245 = pneg %p142
        %p246 = pneg %p139
        %s247 = sand.u32 %s129, 1
        %s248 = scalar_lea.sflag [#allocation6], %s247
        %s249 = sand.u32 %s129, 1
        %s250 = smul.addr %s249, 24
        %s251 = scalar_lea.vmem [#allocation9], %s250
        %s252 = sadd.s32 %s29, %s30
        %v254 = vld [vmem:[%s215] sm:$0x3f]
        %v256 = vcombine.high %v254, %v254
        %v258 = vunpack.c.l.s4 1983009808
        %v259 = vunpack.c.0.s8 %v258
        %v260 = vlaneseq
        %v261 = vshrl.u32 %v260, 7
        %v262 = vsub.s32 %v259, %v261
        %v263 = vrot.slane %v254, %v262
        %v265 = vunpack.c.l.s4 1983009808
        %v266 = vunpack.c.0.s8 %v265
        %v267 = vlaneseq
        %v268 = vshrl.u32 %v267, 7
        %v269 = vsub.s32 %v266, %v268
        %v270 = vrot.slane %v256, %v269
        %273 = vst [vmem:[#allocation2] sm:$0x33] %v263
        %vm274 = vcmask 238592
        %275 = vst.msk [vmem:[#allocation2 + $0x8] sm:$0x3] %vm274, %v270
        %v276 = vld [vmem:[%s215] sm:$0x3f]
        %v278 = vcombine.low %v276, %v276
        %v280 = vunpack.c.l.s4 1983009808
        %v281 = vunpack.c.0.s8 %v280
        %v282 = vlaneseq
        %v283 = vshrl.u32 %v282, 7
        %v284 = vsub.s32 %v281, %v283
        %v285 = vrot.slane %v278, %v284
        %v287 = vunpack.c.l.s4 1983009808
        %v288 = vunpack.c.0.s8 %v287
        %v289 = vlaneseq
        %v290 = vshrl.u32 %v289, 7
        %v291 = vsub.s32 %v288, %v290
        %v292 = vrot.slane %v276, %v291
        %293 = vrot.lane.b32.xlu0 %v285, 127
        %v294 = vpop.permute.xlu0 %293
        %295 = vrot.lane.b32.xlu0 %v292, 127
        %v296 = vpop.permute.xlu0 %295
        %v297 = vrot.slane %v294, 4
        %v298 = vrot.slane %v296, 4
        %vm299 = vcmask 1043456
        %v300 = vsel %vm299, %v297, %v298
        %vm301 = vcmask 1039360
        %v302 = vsel %vm301, %v294, %v300
        %305 = vst [vmem:[#allocation2] sm:$0xcc] %v302
        %vm306 = vcmask 240642
        %307 = vst.msk [vmem:[#allocation2 + $0x8] sm:$0xc] %vm306, %v296
        %v308 = vld [vmem:[%s215] sm:$0x3f]
        %v310 = vcombine.high %v308, %v308
        %v312 = vunpack.c.l.s4 1983009808
        %v313 = vunpack.c.0.s8 %v312
        %v314 = vlaneseq
        %v315 = vshrl.u32 %v314, 7
        %v316 = vsub.s32 %v313, %v315
        %v317 = vrot.slane %v308, %v316
        %v319 = vunpack.c.l.s4 1983009808
        %v320 = vunpack.c.0.s8 %v319
        %v321 = vlaneseq
        %v322 = vshrl.u32 %v321, 7
        %v323 = vsub.s32 %v320, %v322
        %v324 = vrot.slane %v310, %v323
        %325 = vrot.lane.b32.xlu0 %v317, 126
        %v326 = vpop.permute.xlu0 %325
        %327 = vrot.lane.b32.xlu0 %v324, 126
        %v328 = vpop.permute.xlu0 %327
        %v329 = vrot.slane %v326, 4
        %v330 = vrot.slane %v328, 4
        %v331 = vsel %vm299, %v329, %v330
        %vm332 = vcmask 1031168
        %v333 = vsel %vm332, %v326, %v331
        %336 = vst [vmem:[#allocation2 + $0xc] sm:$0x33] %v333
        %337 = vst.msk [vmem:[#allocation2 + $0x14] sm:$0x3] %vm274, %v328
        %v338 = vld [vmem:[%s215] sm:$0x3f]
        %v340 = vcombine.low %v338, %v338
        %v342 = vunpack.c.l.s4 1983009808
        %v343 = vunpack.c.0.s8 %v342
        %v344 = vlaneseq
        %v345 = vshrl.u32 %v344, 7
        %v346 = vsub.s32 %v343, %v345
        %v347 = vrot.slane %v340, %v346
        %v349 = vunpack.c.l.s4 1983009808
        %v350 = vunpack.c.0.s8 %v349
        %v351 = vlaneseq
        %v352 = vshrl.u32 %v351, 7
        %v353 = vsub.s32 %v350, %v352
        %v354 = vrot.slane %v338, %v353
        %355 = vrot.lane.b32.xlu0 %v347, 110
        %v356 = vpop.permute.xlu0 %355
        %357 = vrot.lane.b32.xlu0 %v354, 110
        %v358 = vpop.permute.xlu0 %357
        %v359 = vrot.slane %v356, 4
        %v360 = vrot.slane %v358, 4
        %v361 = vsel %vm299, %v359, %v360
        %vm362 = vcmask 900096
        %v363 = vsel %vm362, %v356, %v361
        %366 = vst [vmem:[#allocation2 + $0xc] sm:$0xcc] %v363
        %367 = vst.msk [vmem:[#allocation2 + $0x14] sm:$0xc] %vm306, %v358
        %v368 = vld [vmem:[%s215] sm:$0x3f]
        %v370 = vcombine.high %v368, %v368
        %v372 = vunpack.c.l.s4 1983009808
        %v373 = vunpack.c.0.s8 %v372
        %v374 = vlaneseq
        %v375 = vshrl.u32 %v374, 7
        %v376 = vsub.s32 %v373, %v375
        %v377 = vrot.slane %v368, %v376
        %v379 = vunpack.c.l.s4 1983009808
        %v380 = vunpack.c.0.s8 %v379
        %v381 = vlaneseq
        %v382 = vshrl.u32 %v381, 7
        %v383 = vsub.s32 %v380, %v382
        %v384 = vrot.slane %v370, %v383
        %385 = vrot.lane.b32.xlu0 %v377, 109
        %v386 = vpop.permute.xlu0 %385
        %387 = vrot.lane.b32.xlu0 %v384, 109
        %v388 = vpop.permute.xlu0 %387
        %v389 = vrot.slane %v386, 4
        %v390 = vrot.slane %v388, 4
        %v391 = vsel %vm299, %v389, %v390
        %vm392 = vcmask 891904
        %v393 = vsel %vm392, %v386, %v391
        %396 = vst [vmem:[#allocation2 + $0x18] sm:$0x33] %v393
        %397 = vst.msk [vmem:[#allocation2 + $0x20] sm:$0x3] %vm274, %v388
        %v398 = vld [vmem:[%s215] sm:$0x3f]
        %v400 = vcombine.low %v398, %v398
        %v402 = vunpack.c.l.s4 1983009808
        %v403 = vunpack.c.0.s8 %v402
        %v404 = vlaneseq
        %v405 = vshrl.u32 %v404, 7
        %v406 = vsub.s32 %v403, %v405
        %v407 = vrot.slane %v400, %v406
        %v409 = vunpack.c.l.s4 1983009808
        %v410 = vunpack.c.0.s8 %v409
        %v411 = vlaneseq
        %v412 = vshrl.u32 %v411, 7
        %v413 = vsub.s32 %v410, %v412
        %v414 = vrot.slane %v398, %v413
        %415 = vrot.lane.b32.xlu0 %v407, 108
        %v416 = vpop.permute.xlu0 %415
        %417 = vrot.lane.b32.xlu0 %v414, 108
        %v418 = vpop.permute.xlu0 %417
        %v419 = vrot.slane %v416, 4
        %v420 = vrot.slane %v418, 4
        %v421 = vsel %vm299, %v419, %v420
        %vm422 = vcmask 883712
        %v423 = vsel %vm422, %v416, %v421
        %426 = vst [vmem:[#allocation2 + $0x18] sm:$0xcc] %v423
        %427 = vst.msk [vmem:[#allocation2 + $0x20] sm:$0xc] %vm306, %v418
        %v428 = vld [vmem:[%s215] sm:$0x3f]
        %v430 = vcombine.high %v428, %v428
        %v432 = vunpack.c.l.s4 1983009808
        %v433 = vunpack.c.0.s8 %v432
        %v434 = vlaneseq
        %v435 = vshrl.u32 %v434, 7
        %v436 = vsub.s32 %v433, %v435
        %v437 = vrot.slane %v428, %v436
        %v439 = vunpack.c.l.s4 1983009808
        %v440 = vunpack.c.0.s8 %v439
        %v441 = vlaneseq
        %v442 = vshrl.u32 %v441, 7
        %v443 = vsub.s32 %v440, %v442
        %v444 = vrot.slane %v430, %v443
        %445 = vrot.lane.b32.xlu0 %v437, 92
        %v446 = vpop.permute.xlu0 %445
        %447 = vrot.lane.b32.xlu0 %v444, 92
        %v448 = vpop.permute.xlu0 %447
        %v449 = vrot.slane %v446, 4
        %v450 = vrot.slane %v448, 4
        %v451 = vsel %vm299, %v449, %v450
        %vm452 = vcmask 752640
        %v453 = vsel %vm452, %v446, %v451
        %456 = vst [vmem:[#allocation2 + $0x24] sm:$0x33] %v453
        %457 = vst.msk [vmem:[#allocation2 + $0x2c] sm:$0x3] %vm274, %v448
        %v458 = vld [vmem:[%s215] sm:$0x3f]
        %v460 = vcombine.low %v458, %v458
        %v462 = vunpack.c.l.s4 1983009808
        %v463 = vunpack.c.0.s8 %v462
        %v464 = vlaneseq
        %v465 = vshrl.u32 %v464, 7
        %v466 = vsub.s32 %v463, %v465
        %v467 = vrot.slane %v460, %v466
        %v469 = vunpack.c.l.s4 1983009808
        %v470 = vunpack.c.0.s8 %v469
        %v471 = vlaneseq
        %v472 = vshrl.u32 %v471, 7
        %v473 = vsub.s32 %v470, %v472
        %v474 = vrot.slane %v458, %v473
        %475 = vrot.lane.b32.xlu0 %v467, 91
        %v476 = vpop.permute.xlu0 %475
        %477 = vrot.lane.b32.xlu0 %v474, 91
        %v478 = vpop.permute.xlu0 %477
        %v479 = vrot.slane %v476, 4
        %v480 = vrot.slane %v478, 4
        %v481 = vsel %vm299, %v479, %v480
        %vm482 = vcmask 744448
        %v483 = vsel %vm482, %v476, %v481
        %486 = vst [vmem:[#allocation2 + $0x24] sm:$0xcc] %v483
        %487 = vst.msk [vmem:[#allocation2 + $0x2c] sm:$0xc] %vm306, %v478
        %v488 = vld [vmem:[%s215] sm:$0x3f]
        %v490 = vcombine.high %v488, %v488
        %v492 = vunpack.c.l.s4 1983009808
        %v493 = vunpack.c.0.s8 %v492
        %v494 = vlaneseq
        %v495 = vshrl.u32 %v494, 7
        %v496 = vsub.s32 %v493, %v495
        %v497 = vrot.slane %v488, %v496
        %v499 = vunpack.c.l.s4 1983009808
        %v500 = vunpack.c.0.s8 %v499
        %v501 = vlaneseq
        %v502 = vshrl.u32 %v501, 7
        %v503 = vsub.s32 %v500, %v502
        %v504 = vrot.slane %v490, %v503
        %505 = vrot.lane.b32.xlu0 %v497, 90
        %v506 = vpop.permute.xlu0 %505
        %507 = vrot.lane.b32.xlu0 %v504, 90
        %v508 = vpop.permute.xlu0 %507
        %v509 = vrot.slane %v506, 4
        %v510 = vrot.slane %v508, 4
        %v511 = vsel %vm299, %v509, %v510
        %vm512 = vcmask 736256
        %v513 = vsel %vm512, %v506, %v511
        %516 = vst [vmem:[#allocation2 + $0x30] sm:$0x33] %v513
        %517 = vst.msk [vmem:[#allocation2 + $0x38] sm:$0x3] %vm274, %v508
        %v518 = vld [vmem:[%s224] sm:$0xf]
        %v519 = vld [vmem:[#allocation2] sm:$0xff]
        %v520 = vld [vmem:[#allocation2 + $0x8] sm:$0xf]
        %v521 = vld [vmem:[#allocation2 + $0xc] sm:$0xff]
        %v522 = vld [vmem:[#allocation2 + $0x14] sm:$0xf]
        %v523 = vld [vmem:[#allocation2 + $0x18] sm:$0xff]
        %v524 = vld [vmem:[#allocation2 + $0x20] sm:$0xf]
        %v525 = vld [vmem:[#allocation2 + $0x24] sm:$0xff]
        %v526 = vld [vmem:[#allocation2 + $0x2c] sm:$0xf]
        %v527 = vld [vmem:[#allocation2 + $0x30] sm:$0x33]
        %v528 = vld [vmem:[#allocation2 + $0x38] sm:$0x3]
        %v539 = vunpack.c.l.b16 %v519
        %v540 = vunpack.c.h.b16 %v519
        %v541 = vunpack.c.l.b16 %v520
        %v542 = vunpack.c.l.b16 %v521
        %v543 = vunpack.c.h.b16 %v521
        %v544 = vunpack.c.l.b16 %v522
        %v545 = vunpack.c.l.b16 %v523
        %v546 = vunpack.c.h.b16 %v523
        %v547 = vunpack.c.l.b16 %v524
        %v548 = vunpack.c.l.b16 %v525
        %v549 = vunpack.c.h.b16 %v525
        %v550 = vunpack.c.l.b16 %v526
        %v551 = vunpack.c.l.b16 %v527
        %v552 = vunpack.c.h.b16 %v527
        %v553 = vunpack.c.l.b16 %v528
        %v554 = vpack.c.b16 %v542, %v539
        %v555 = vpack.c.b16 %v543, %v540
        %v556 = vpack.c.b16 %v544, %v541
        %v557 = vpack.c.b16 %v548, %v545
        %v558 = vpack.c.b16 %v549, %v546
        %v559 = vpack.c.b16 %v550, %v547
        %v560 = vpack.c.b16 %v551, %v551
        %v561 = vpack.c.b16 %v552, %v552
        %v562 = vpack.c.b16 %v553, %v553
        %vm569 = vcmask 293888
        %v571 = vsel %vm569, %v518, 0
        %vm573 = vcmask 1041408
        %v575 = vsel %vm573, %v560, 0
        %v578 = vsel %vm573, %v561, 0
        %v581 = vsel %vm573, %v562, 0
        %583 = vmatprep.subr.bf16.mxu0 0
        %584 = vmatpush1.bf16.msra.mxu0 0
        %585 = vmatprep.subr.bf16.mxu0 0
        %586 = vmatpush1.bf16.msra.mxu0 0
        %587 = vmatprep.subr.bf16.mxu0 0
        %588 = vmatpush1.bf16.msra.mxu0 0
        %589 = vmatprep.subr.bf16.mxu0 0
        %590 = vmatpush1.bf16.msra.mxu0 0
        %591 = vmatprep.subr.bf16.mxu0 0
        %592 = vmatpush1.bf16.msra.mxu0 0
        %593 = vmatprep.subr.bf16.mxu0 %v578
        %594 = vmatpush1.bf16.msra.mxu0 %v575
        %595 = vmatprep.subr.bf16.mxu0 %v558
        %596 = vmatpush1.bf16.msra.mxu0 %v557
        %597 = vmatprep.subr.bf16.mxu0 %v555
        %598 = vmatpush1.bf16.msra.mxu0 %v554
        %599 = vmatprep.subr.bf16.mxu0 0
        %600 = vmatpush2.bf16.msra.mxu0 0
        %601 = vmatprep.subr.bf16.mxu0 0
        %602 = vmatpush2.bf16.msra.mxu0 0
        %603 = vmatprep.subr.bf16.mxu0 0
        %604 = vmatpush2.bf16.msra.mxu0 0
        %605 = vmatprep.subr.bf16.mxu0 0
        %606 = vmatpush2.bf16.msra.mxu0 0
        %607 = vmatprep.subr.bf16.mxu0 0
        %608 = vmatpush2.bf16.msra.mxu0 0
        %609 = vmatprep.subr.bf16.mxu0 0
        %610 = vmatpush2.bf16.msra.mxu0 0
        %611 = vmatprep.subr.bf16.mxu0 0
        %612 = vmatpush2.bf16.msra.mxu0 0
        %613 = vmatprep.subr.bf16.mxu0 0
        %614 = vmatpush2.bf16.msra.mxu0 0
        %615 = vmatprep.mubr.bf16.mxu0 0
        %616 = vmatmul.mubr.bf16.gmra.mxu0 %v571
        %v617 = vpop.f32.mrf.mxu0
        %v618 = vadd.f32 0.0, %v617
        %v619 = vpop.f32.mrf.mxu0
        %v620 = vadd.f32 0.0, %v619
        %v621 = vpop.f32.mrf.mxu0
        %v622 = vpop.f32.mrf.mxu0
        %623 = vdwg.mxu0
        %624 = vmatprep.subr.bf16.mxu0 0
        %625 = vmatpush1.bf16.msra.mxu0 0
        %626 = vmatprep.subr.bf16.mxu0 0
        %627 = vmatpush1.bf16.msra.mxu0 0
        %628 = vmatprep.subr.bf16.mxu0 0
        %629 = vmatpush1.bf16.msra.mxu0 0
        %630 = vmatprep.subr.bf16.mxu0 0
        %631 = vmatpush1.bf16.msra.mxu0 0
        %632 = vmatprep.subr.bf16.mxu0 0
        %633 = vmatpush1.bf16.msra.mxu0 0
        %634 = vmatprep.subr.bf16.mxu0 0
        %635 = vmatpush1.bf16.msra.mxu0 %v581
        %636 = vmatprep.subr.bf16.mxu0 0
        %637 = vmatpush1.bf16.msra.mxu0 %v559
        %638 = vmatprep.subr.bf16.mxu0 0
        %639 = vmatpush1.bf16.msra.mxu0 %v556
        %640 = vmatprep.subr.bf16.mxu0 0
        %641 = vmatpush2.bf16.msra.mxu0 0
        %642 = vmatprep.subr.bf16.mxu0 0
        %643 = vmatpush2.bf16.msra.mxu0 0
        %644 = vmatprep.subr.bf16.mxu0 0
        %645 = vmatpush2.bf16.msra.mxu0 0
        %646 = vmatprep.subr.bf16.mxu0 0
        %647 = vmatpush2.bf16.msra.mxu0 0
        %648 = vmatprep.subr.bf16.mxu0 0
        %649 = vmatpush2.bf16.msra.mxu0 0
        %650 = vmatprep.subr.bf16.mxu0 0
        %651 = vmatpush2.bf16.msra.mxu0 0
        %652 = vmatprep.subr.bf16.mxu0 0
        %653 = vmatpush2.bf16.msra.mxu0 0
        %654 = vmatprep.subr.bf16.mxu0 0
        %655 = vmatpush2.bf16.msra.mxu0 0
        %656 = vmatprep.mubr.bf16.mxu0 0
        %657 = vmatmul.mubr.bf16.gmra.mxu0 %v571
        %v658 = vpop.f32.mrf.mxu0
        %v659 = vadd.f32 0.0, %v658
        %v660 = vpop.f32.mrf.mxu0
        %v661 = vpop.f32.mrf.mxu0
        %v662 = vpop.f32.mrf.mxu0
        %663 = vdwg.mxu0
        %p664 = scmp.eq.s32.totalorder %s30, 0
        // Predicated region
        $region41: #{tpu_custom_call.1} parent=31 // pred_check
          %p665 = pneg %p664
        $region42: #{tpu_custom_call.1} parent=31 // pred_check_branch
          %667 = sbr.rel (%p665) target = $region44
        $region43: #{tpu_custom_call.1} parent=31 // pred_region
          %v668 = vld [vmem:[%s2] sm:$0xff]
          %670 = vset.pattern.permute.xlu0 0
          %671 = vperm.xlu0 %670, %v668
          %v672 = vpop.permute.xlu0 %671
          %v674 = vadd.f32 %v618, %v672
          %v675 = vadd.f32 %v620, %v672
          %v676 = vadd.f32 %v659, %v672
          %677 = vst [vmem:[#allocation3] sm:$0xff] %v674
          %678 = vst [vmem:[#allocation3 + $0x8] sm:$0xff] %v675
          %vm679 = vcmask 244736
          %680 = vst.msk [vmem:[#allocation3 + $0x10] sm:$0xff] %vm679, %v676
        $region44: #{tpu_custom_call.1} parent=31 // pred_fallthru
          _
        %p681 = scmp.gt.s32.totalorder %s30, 0
        // Predicated region
        $region45: #{tpu_custom_call.1} parent=31 // pred_check
          %p682 = pneg %p681
        $region46: #{tpu_custom_call.1} parent=31 // pred_check_branch
          %684 = sbr.rel (%p682) target = $region48
        $region47: #{tpu_custom_call.1} parent=31 // pred_region
          %v685 = vld [vmem:[#allocation3] sm:$0xff]
          %v686 = vld [vmem:[#allocation3 + $0x8] sm:$0xff]
          %v687 = vld [vmem:[#allocation3 + $0x10] sm:$0xff]
          %v688 = vadd.f32 %v685, %v618
          %v689 = vadd.f32 %v686, %v620
          %v690 = vadd.f32 %v687, %v659
          %691 = vst [vmem:[#allocation3] sm:$0xff] %v688
          %692 = vst [vmem:[#allocation3 + $0x8] sm:$0xff] %v689
          %vm693 = vcmask 244736
          %694 = vst.msk [vmem:[#allocation3 + $0x10] sm:$0xff] %vm693, %v690
        $region48: #{tpu_custom_call.1} parent=31 // pred_fallthru
          _
        %p695 = scmp.eq.s32.totalorder %s30, 2
        // Predicated region
        $region49: #{tpu_custom_call.1} parent=31 // pred_check
          %p696 = pneg %p695
        $region50: #{tpu_custom_call.1} parent=31 // pred_check_branch
          %698 = sbr.rel (%p696) target = $region52
        $region51: #{tpu_custom_call.1} parent=31 // pred_region
          %v699 = vld [vmem:[#allocation3] sm:$0xff]
          %v700 = vld [vmem:[#allocation3 + $0x8] sm:$0xff]
          %v701 = vld [vmem:[#allocation3 + $0x10] sm:$0xff]
          %702 = vst [vmem:[%s251] sm:$0xff] %v699
          %703 = vst [vmem:[%s251 + $0x8] sm:$0xff] %v700
          %vm704 = vcmask 244736
          %705 = vst.msk [vmem:[%s251 + $0x10] sm:$0xff] %vm704, %v701
        $region52: #{tpu_custom_call.1} parent=31 // pred_fallthru
          _
        %s706 = sand.u32 %s129, 1
        %s707 = scalar_lea.sflag [#allocation6], %s706
        %s708 = sand.u32 %s129, 1
        %s709 = smul.addr %s708, 24
        %s710 = scalar_lea.vmem [#allocation9], %s709
        // Predicated region
        $region53: #{tpu_custom_call.1} parent=31 // pred_check
          %p711 = pneg %p139
        $region54: #{tpu_custom_call.1} parent=31 // pred_check_branch
          %713 = sbr.rel (%p711) target = $region56
        $region55: #{tpu_custom_call.1} parent=31 // pred_region
          %s715 = ssub.s32 384, 384
          %716 = vsyncadd %s707, %s715
          %s717 = smul.addr %s29, 3
          %s718 = smul.addr %s28, 24
          %s719 = sadd.s32 %s717, %s718
          %s720 = smul.addr %s719, 128
          %s721 = scalar_lea.hbm %s3, %s720
          %s723 = sshll.u32 %s710, 4
          %s724 = int_to_ptr.vmem [resolvable:$true] %s723
          %726 = dma.vmem_to_hbm [thread:$0]  %s724, 384, %s721, %s707
        $region56: #{tpu_custom_call.1} parent=31 // pred_fallthru
          _
      $region32: #{tpu_custom_call.1} parent=5 // pred_fallthru
        _
      %p727 = scmp.le.s32.totalorder 2, %s18
      // Predicated region
      $region57: #{tpu_custom_call.1} parent=5 // pred_check
        %p728 = pneg %p727
      $region58: #{tpu_custom_call.1} parent=5 // pred_check_branch
        %730 = sbr.rel (%p728) target = $region60
      $region59: #{tpu_custom_call.1} parent=5 // pred_region
        %s731 = ssub.s32 %s18, 2
        // Predicated region
        $region61: #{tpu_custom_call.1} parent=59 // pred_check
          %p732 = pneg %p145
        $region62: #{tpu_custom_call.1} parent=59 // pred_check_branch
          %734 = sbr.rel (%p732) target = $region64
        $region63: #{tpu_custom_call.1} parent=59 // pred_region
          %s735 = sand.u32 %s130, 1
          %s736 = scalar_lea.sflag [#allocation6], %s735
          %s737 = sand.u32 %s130, 1
          %s738 = smul.addr %s737, 24
          %s739 = scalar_lea.vmem [#allocation9], %s738
          %740 = dma.done %s736, 384
        $region64: #{tpu_custom_call.1} parent=59 // pred_fallthru
          _
      $region60: #{tpu_custom_call.1} parent=5 // pred_fallthru
        _
    $region6: #{tpu_custom_call.1} parent=1 // loop_footer
      %s22 = sadd.s32 1, %s18
    $region7: #{tpu_custom_call.1} parent=1 // loop_footer_branch
      %17 = sbr.rel target = $region3
    $region8: #{tpu_custom_call.1} parent=1 // loop_exit
      _
    %741 = vsyncpa [#allocation5], 1
    %s742 = scalar_lea.sflag [#allocation5], 1
    %743 = vsyncpa %s742, 1
    %744 = vsyncpa [#allocation8], 1
    %s745 = scalar_lea.sflag [#allocation8], 1
    %746 = vsyncpa %s745, 1
    %747 = vsyncpa [#allocation6], 1
    %s748 = scalar_lea.sflag [#allocation6], 1
    %749 = vsyncpa %s748, 1

</llo_original>
